<compile_context>
chip_gen: v5e
topology: v5e:2x2
jax: 0.10.0
libtpu: 0.0.40
codegen_flags: <defaults>
</compile_context>

<pallas_src>
import math

import jax
import jax.numpy as jnp
from jax.experimental import pallas as pl
from jax.experimental.pallas import tpu as pltpu


_LANE = 128            # lane alignment for last dims
_BF16_SUBLANE = 16     # bf16 sublane packing for the batch tile
_W_RESIDENT_BYTES = 24 << 20   # budget for a single resident bf16 weight buffer
_W_STREAM_BYTES = 16 << 20     # budget for a double-buffered streamed weight
_VMEM_SOFT_CAP = 48 << 20      # total working-set target (fits v7x 64 MiB VMEM)


# ----------------------------- Pallas kernel -------------------------------

def _random_projection_kernel(x_ref, w_ref, o_ref):
    # x: (tb, din_p) bf16   W: (din_p, tn) bf16   -> f32 accumulation on MXU.
    acc = jnp.dot(x_ref[...], w_ref[...], preferred_element_type=jnp.float32)
    # sin lowers to range-reduction + polynomial on the VPU; kept in f32 for
    # accuracy (bf16 epilogue is a v6e/v7x-only micro-opt — verify via bundle
    # dump before switching; never on v5e).
    o_ref[...] = jnp.sin(acc).astype(o_ref.dtype)


# ------------------------------ tile planning -------------------------------

def _round_up(x, m):
    return (x + m - 1) // m * m


def _choose_tn(din_p, dout_p, nb):
    """dout tile: keep the whole weight resident when it fits the budget and
    the batch grid already feeds both v7x TensorCores; otherwise pick the
    largest 128-aligned divisor of dout_p that keeps the double-buffered
    weight stream under budget and leaves >= 2 programs."""
    w_full = 2 * din_p * dout_p
    if w_full <= _W_RESIDENT_BYTES and (nb >= 2 or dout_p <= _LANE):
        return dout_p
    best = _LANE
    t = _LANE
    while t <= dout_p:
        if dout_p % t == 0:
            fits = 2 * 2 * din_p * t <= _W_STREAM_BYTES     # 2 bufs * bf16
            feeds_two_cores = nb >= 2 or (dout_p // t) >= 2
            if fits and feeds_two_cores:
                best = t
        t += _LANE
    return best


def _vmem_estimate(tb, din_p, tn, nj, out_itemsize):
    x_b = 2 * tb * din_p * 2                       # bf16 x, double-buffered
    w_b = (1 if nj == 1 else 2) * din_p * tn * 2   # resident=1 buf, streamed=2
    o_b = 2 * tb * tn * out_itemsize               # output, double-buffered
    return x_b + w_b + o_b


def _make_weight_spec(din_p, tn, nj):
    if nj == 1:
        # Constant block -> never re-fetched; single-buffer it so only ONE copy
        # of the weight lives in VMEM (frees room for larger batch tiles).
        try:
            return pl.BlockSpec((din_p, tn), lambda i, j: (0, 0),
                                pipeline_mode=pl.Buffered(1))
        except Exception:   # older jax without pipeline_mode / Buffered(1)
            return pl.BlockSpec((din_p, tn), lambda i, j: (0, 0))
    return pl.BlockSpec((din_p, tn), lambda i, j: (0, j))


# ------------------------------ forward wrapper ------------------------------

def random_projection(params, states, *, block_b=512, out_dtype=jnp.float32):
    """sin(states @ W) — PyTorch RandomProjection.forward (detach == stop_gradient).

    `params` comes from init_random_projection (bf16 weight pre-padded to
    128-aligned (din_p, dout_p)).  Handles arbitrary leading batch dims and
    unaligned feature sizes via zero padding (math unchanged) + final slice.
    """
    din = int(params["dim_input"])
    dout = int(params["dim_output"])
    if states.shape[-1] != din:
        raise ValueError(f"states last dim {states.shape[-1]} != dim_input {din}")
    lead_shape = states.shape[:-1]

    # Pre-cast to bf16 (halves the activation HBM->VMEM stream).
    x = states.reshape(-1, din).astype(jnp.bfloat16)
    B = x.shape[0]

    din_p = _round_up(din, _LANE)
    dout_p = _round_up(dout, _LANE)
    out_itemsize = jnp.dtype(out_dtype).itemsize

    # Batch tile: multiple of 16 (bf16 sublane packing), default up to 512 rows.
    tb = min(block_b, _round_up(max(B, 1), _BF16_SUBLANE))
    tb = _round_up(tb, _BF16_SUBLANE)
    Bp = _round_up(B, tb)
    nb = Bp // tb

    tn = _choose_tn(din_p, dout_p, nb)
    nj = dout_p // tn

    # Shrink the batch tile if the working set would overflow the soft VMEM cap
    # (only relevant for very large din; keeps v7x's 64 MiB happy).
    while tb > _BF16_SUBLANE and _vmem_estimate(tb, din_p, tn, nj, out_itemsize) > _VMEM_SOFT_CAP:
        tb = _round_up(max(tb // 2, _BF16_SUBLANE), _BF16_SUBLANE)
        Bp = _round_up(B, tb)
        nb = Bp // tb

    # Pad activations (cast already folded in above; skipped when aligned).
    if (Bp, din_p) != (B, din):
        x = jnp.pad(x, ((0, Bp - B), (0, din_p - din)))

    # Weight: pre-padded / pre-cast at init -> fast path is a no-op here.
    w = params["w"]
    if w.dtype != jnp.bfloat16:
        w = w.astype(jnp.bfloat16)
    if w.shape != (din_p, dout_p):   # slow fallback for raw (din, dout) weights
        w = jnp.pad(w, ((0, din_p - w.shape[0]), (0, dout_p - w.shape[1])))

    vmem_limit = int(1.25 * _vmem_estimate(tb, din_p, tn, nj, out_itemsize)) + (2 << 20)
    vmem_limit = max(16 << 20, min(vmem_limit, 64 << 20))

    cost = pl.CostEstimate(
        flops=2 * Bp * din_p * dout_p,
        transcendentals=Bp * dout_p,
        bytes_accessed=Bp * din_p * 2 + din_p * dout_p * 2 + Bp * dout_p * out_itemsize,
    )

    out_p = pl.pallas_call(
        _random_projection_kernel,
        out_shape=jax.ShapeDtypeStruct((Bp, dout_p), out_dtype),
        grid=(nb, nj),
        in_specs=[
            pl.BlockSpec((tb, din_p), lambda i, j: (i, 0)),   # x: batch-tiled, reused over j
            _make_weight_spec(din_p, tn, nj),                 # W: resident or dout-streamed
        ],
        out_specs=pl.BlockSpec((tb, tn), lambda i, j: (i, j)),
        compiler_params=pltpu.CompilerParams(
            dimension_semantics=("parallel", "parallel"),     # megacore sharding on v7x
            vmem_limit_bytes=vmem_limit,
        ),
        cost_estimate=cost,
    )(x, w)

    out = out_p[:B, :dout].reshape(*lead_shape, dout)
    # torch .detach() -> stop_gradient (no effect on forward values).
    return jax.lax.stop_gradient(out)


# --------------------------- parameter creation -----------------------------

def init_random_projection(key, dim_input, dim_output):
    """PyTorch nn.Linear(dim_input, dim_output, bias=False) default init,
    stored transposed as (dim_input, dim_output), pre-cast to bf16 and
    pre-padded to 128-aligned (din_p, dout_p) so forward never pays a per-call
    pad/cast HBM copy of the weight."""
    bound = 1.0 / math.sqrt(dim_input)
    w = jax.random.uniform(key, (dim_input, dim_output), jnp.float32, -bound, bound)
    din_p = _round_up(dim_input, _LANE)
    dout_p = _round_up(dim_output, _LANE)
    w = jnp.pad(w.astype(jnp.bfloat16),
                ((0, din_p - dim_input), (0, dout_p - dim_output)))
    return {"w": w, "dim_input": dim_input, "dim_output": dim_output}


# ---------------------------------- main -------------------------------------

def _ref_random_projection(params, states):
    """Pure-JAX reference matching the kernel's numerics (bf16 in, f32 acc)."""
    din, dout = params["dim_input"], params["dim_output"]
    w = params["w"][:din, :dout]
    x = states.reshape(-1, din).astype(jnp.bfloat16)
    y = jnp.sin(jnp.dot(x, w, preferred_element_type=jnp.float32))
    return y.reshape(*states.shape[:-1], dout)


if __name__ == "__main__":
    key = jax.random.PRNGKey(0)
    k1, k2, k3, kx1, kx2, kx3 = jax.random.split(key, 6)

    # Case 1: small, unaligned shapes straight from the module contract
    # (resident single-buffered weight, single batch tile).
    p1 = init_random_projection(k1, 64, 32)
    x1 = jax.random.normal(kx1, (2, 64), jnp.float32)
    y1 = random_projection(p1, x1)
    jax.block_until_ready(y1)
    assert y1.shape == (2, 32)
    assert jnp.allclose(y1, _ref_random_projection(p1, x1), atol=1e-4, rtol=1e-4)

    # Case 2: leading batch dims + multiple batch tiles (block_b forced small).
    p2 = init_random_projection(k2, 96, 128)
    x2 = jax.random.normal(kx2, (3, 100, 96), jnp.float32)
    y2 = random_projection(p2, x2, block_b=128)
    jax.block_until_ready(y2)
    assert y2.shape == (3, 100, 128)
    assert jnp.allclose(y2, _ref_random_projection(p2, x2), atol=1e-4, rtol=1e-4)

    # Case 3: tiny batch + wide output -> dout is tiled so a v7x megacore gets
    # >= 2 programs even when the batch grid degenerates to one tile.
    p3 = init_random_projection(k3, 128, 512)
    x3 = jax.random.normal(kx3, (4, 128), jnp.float32)
    y3 = random_projection(p3, x3)
    jax.block_until_ready(y3)
    assert y3.shape == (4, 512)
    assert jnp.allclose(y3, _ref_random_projection(p3, x3), atol=1e-4, rtol=1e-4)

    # Outputs of sin must lie in [-1, 1].
    assert float(jnp.max(jnp.abs(y3))) <= 1.0 + 1e-6

    print("KERNEL_OK")
</pallas_src>

<mosaic_0001>
module attributes {stable_mosaic.version = 11 : i64} {
  func.func @_random_projection_kernel(%arg0: i32, %arg1: i32, %arg2: memref<16x128xbf16, #tpu.memory_space<vmem>>, %arg3: memref<128x128xbf16, #tpu.memory_space<vmem>>, %arg4: memref<16x128xf32, #tpu.memory_space<vmem>>) attributes {dimension_semantics = [#tpu.dimension_semantics<parallel>, #tpu.dimension_semantics<parallel>], iteration_bounds = array<i64: 1, 1>, scalar_prefetch = 0 : i64, scratch_operands = 0 : i64, tpu.core_type = #tpu.core_type<tc>, window_params = [{transform_indices = @transform_0, window_bounds = array<i64: 16, 128>}, {pipeline_mode = #tpu.pipeline_mode<synchronous>, transform_indices = @transform_1, window_bounds = array<i64: 128, 128>}, {transform_indices = @transform_2, window_bounds = array<i64: 16, 128>}]} {
    %c0 = arith.constant 0 : index
    %c0_0 = arith.constant 0 : index
    %0 = vector.load %arg2[%c0, %c0_0] : memref<16x128xbf16, #tpu.memory_space<vmem>>, vector<16x128xbf16>
    %c0_1 = arith.constant 0 : index
    %c0_2 = arith.constant 0 : index
    %1 = vector.load %arg3[%c0_1, %c0_2] : memref<128x128xbf16, #tpu.memory_space<vmem>>, vector<128x128xbf16>
    %cst = arith.constant dense<0.000000e+00> : vector<16x128xf32>
    %2 = tpu.matmul %0, %1, %cst {dimension_numbers = #tpu.dot_dimension_numbers<[1], [0], [0], [1], [0, 0, 1, 1], [], []>} : vector<16x128xbf16>, vector<128x128xbf16>, vector<16x128xf32> -> vector<16x128xf32>
    %3 = math.sin %2 : vector<16x128xf32>
    %c0_3 = arith.constant 0 : index
    %c0_4 = arith.constant 0 : index
    %4 = vector.load %arg4[%c0_3, %c0_4] : memref<16x128xf32, #tpu.memory_space<vmem>>, vector<16x128xf32>
    tpu.vector_store %arg4[%c0_3, %c0_4], %3 {strides = array<i32>} : memref<16x128xf32, #tpu.memory_space<vmem>>, vector<16x128xf32>,
    return
  }
  func.func @transform_0(%arg0: i32, %arg1: i32) -> (i32, i32) {
    %c0_i32 = arith.constant 0 : i32
    %c0_i32_0 = arith.constant 0 : i32
    return %arg0, %c0_i32 : i32, i32
  }
  func.func @transform_1(%arg0: i32, %arg1: i32) -> (i32, i32) {
    %c0_i32 = arith.constant 0 : i32
    %c0_i32_0 = arith.constant 0 : i32
    %c0_i32_1 = arith.constant 0 : i32
    return %c0_i32, %c0_i32_0 : i32, i32
  }
  func.func @transform_2(%arg0: i32, %arg1: i32) -> (i32, i32) {
    %c0_i32 = arith.constant 0 : i32
    return %arg0, %arg1 : i32, i32
  }
}

</mosaic_0001>

<llo_original>
// kernel: tpu_custom_call.1
$region0: #{tpu_custom_call.1}
  #allocation0 [shape = 'u32[]', space=smem, size = 0x4, offset = 0x4, fixed_abs, tag = 'smem constant byte address 0x4 - core index']
  #allocation1 [shape = 'u32[72,128]{1,0:T(1,128)}', space=vmem, size = 0x9000, scoped, tag = 'internal scratch']
  %s0 = inlined_call_operand.hbm [shape: bf16[16,128], index: 0, kind: input, shape index: {}]
  %s1 = inlined_call_operand.hbm [shape: bf16[128,128], index: 1, kind: input, shape index: {}]
  %s2 = inlined_call_operand.hbm [shape: f32[16,128], index: 2, kind: output, shape index: {}]
  %s3 = sld [smem:[#allocation0]]
  $region26: #{tpu_custom_call.1} parent=0
    _
  %s5 = ssub.s32 1, %s3
  %s6 = scalar_select 0, %s5, %s3
  $region1: #{tpu_custom_call.1} parent=0
    #allocation2 [shape = 'u8[4096]{0}', space=vmem, size = 0x1000, scoped, tag = 'input window, operand 0, single buffered']
    #allocation3 [shape = 's32[1]{0}', space=sflag, size = 0x4, scoped, tag = 'scoped memory for tpu_custom_call.1']
    #allocation4 [shape = 's32[1]{0}', space=sflag, size = 0x4, scoped, tag = 'scoped memory for tpu_custom_call.1']
    #allocation5 [shape = 'u8[32768]{0}', space=vmem, size = 0x8000, scoped, tag = 'input window, operand 1, single buffered']
    #allocation6 [shape = 's32[1]{0}', space=sflag, size = 0x4, scoped, tag = 'scoped memory for tpu_custom_call.1']
    #allocation7 [shape = 'u8[8192]{0}', space=vmem, size = 0x2000, scoped, tag = 'output window, operand 0, single buffered']
    %7 = vsyncpa [#allocation3], 0
    %8 = vsyncpa [#allocation6], 0
    %9 = vsyncpa [#allocation4], 0
    // Predicated region
    $region2: #{tpu_custom_call.1} parent=1 // pred_check
      _
    $region3: #{tpu_custom_call.1} parent=1 // pred_check_branch
      %11 = sbr.rel (0) target = $region5
    $region4: #{tpu_custom_call.1} parent=1 // pred_region
      %13 = vsyncadd [#allocation3], 0
      %s14 = sshll.u32 %s0, 4
      %s15 = int_to_ptr.hbm [resolvable:$true] %s14
      %s16 = sshll.u32 [#allocation2], 4
      %s17 = int_to_ptr.vmem [resolvable:$true] %s16
      %22 = dma.hbm_to_vmem [thread:$0]  %s15, 128, %s17, [#allocation3], 64, 64, 4
    $region5: #{tpu_custom_call.1} parent=1 // pred_fallthru
      _
    // Predicated region
    $region6: #{tpu_custom_call.1} parent=1 // pred_check
      _
    $region7: #{tpu_custom_call.1} parent=1 // pred_check_branch
      %24 = sbr.rel (0) target = $region9
    $region8: #{tpu_custom_call.1} parent=1 // pred_region
      %26 = vsyncadd [#allocation6], 0
      %s27 = sshll.u32 %s1, 4
      %s28 = int_to_ptr.hbm [resolvable:$true] %s27
      %s29 = sshll.u32 [#allocation5], 4
      %s30 = int_to_ptr.vmem [resolvable:$true] %s29
      %35 = dma.hbm_to_vmem [thread:$0]  %s28, 1024, %s30, [#allocation6], 64, 64, 4
    $region9: #{tpu_custom_call.1} parent=1 // pred_fallthru
      _
    // Predicated region
    $region10: #{tpu_custom_call.1} parent=1 // pred_check
      _
    $region11: #{tpu_custom_call.1} parent=1 // pred_check_branch
      %37 = sbr.rel (0) target = $region13
    $region12: #{tpu_custom_call.1} parent=1 // pred_region
      %39 = dma.done [#allocation3], 128
    $region13: #{tpu_custom_call.1} parent=1 // pred_fallthru
      _
    // Predicated region
    $region14: #{tpu_custom_call.1} parent=1 // pred_check
      _
    $region15: #{tpu_custom_call.1} parent=1 // pred_check_branch
      %41 = sbr.rel (0) target = $region17
    $region16: #{tpu_custom_call.1} parent=1 // pred_region
      %43 = dma.done [#allocation6], 1024
    $region17: #{tpu_custom_call.1} parent=1 // pred_fallthru
      _
    %v44 = vld [vmem:[#allocation2] sm:$0xf]
    %v45 = vld [vmem:[#allocation2 + $0x4] sm:$0xf]
    %v46 = vld [vmem:[#allocation5] sm:$0xf]
    %v47 = vld [vmem:[#allocation5 + $0x4] sm:$0xf]
    %v48 = vld [vmem:[#allocation5 + $0x8] sm:$0xf]
    %v49 = vld [vmem:[#allocation5 + $0xc] sm:$0xf]
    %v50 = vld [vmem:[#allocation5 + $0x10] sm:$0xf]
    %v51 = vld [vmem:[#allocation5 + $0x14] sm:$0xf]
    %v52 = vld [vmem:[#allocation5 + $0x18] sm:$0xf]
    %v53 = vld [vmem:[#allocation5 + $0x1c] sm:$0xf]
    %v54 = vld [vmem:[#allocation5 + $0x20] sm:$0xf]
    %v55 = vld [vmem:[#allocation5 + $0x24] sm:$0xf]
    %v56 = vld [vmem:[#allocation5 + $0x28] sm:$0xf]
    %v57 = vld [vmem:[#allocation5 + $0x2c] sm:$0xf]
    %v58 = vld [vmem:[#allocation5 + $0x30] sm:$0xf]
    %v59 = vld [vmem:[#allocation5 + $0x34] sm:$0xf]
    %v60 = vld [vmem:[#allocation5 + $0x38] sm:$0xf]
    %v61 = vld [vmem:[#allocation5 + $0x3c] sm:$0xf]
    %v64 = vunpack.c.l.b16 %v44
    %v65 = vunpack.c.l.b16 %v45
    %v66 = vpack.c.b16 %v65, %v64
    %v84 = vunpack.c.l.b16 %v46
    %v85 = vunpack.c.l.b16 %v47
    %v86 = vunpack.c.l.b16 %v48
    %v87 = vunpack.c.l.b16 %v49
    %v88 = vunpack.c.l.b16 %v50
    %v89 = vunpack.c.l.b16 %v51
    %v90 = vunpack.c.l.b16 %v52
    %v91 = vunpack.c.l.b16 %v53
    %v92 = vunpack.c.l.b16 %v54
    %v93 = vunpack.c.l.b16 %v55
    %v94 = vunpack.c.l.b16 %v56
    %v95 = vunpack.c.l.b16 %v57
    %v96 = vunpack.c.l.b16 %v58
    %v97 = vunpack.c.l.b16 %v59
    %v98 = vunpack.c.l.b16 %v60
    %v99 = vunpack.c.l.b16 %v61
    %v100 = vpack.c.b16 %v85, %v84
    %v101 = vpack.c.b16 %v87, %v86
    %v102 = vpack.c.b16 %v89, %v88
    %v103 = vpack.c.b16 %v91, %v90
    %v104 = vpack.c.b16 %v93, %v92
    %v105 = vpack.c.b16 %v95, %v94
    %v106 = vpack.c.b16 %v97, %v96
    %v107 = vpack.c.b16 %v99, %v98
    %116 = vmatpush.bf16.msra.mxu0 %v107
    %117 = vmatpush.bf16.msra.mxu0 %v106
    %118 = vmatpush.bf16.msra.mxu0 %v105
    %119 = vmatpush.bf16.msra.mxu0 %v104
    %120 = vmatpush.bf16.msra.mxu0 %v103
    %121 = vmatpush.bf16.msra.mxu0 %v102
    %122 = vmatpush.bf16.msra.mxu0 %v101
    %123 = vmatpush.bf16.msra.mxu0 %v100
    %124 = vmatmul.bf16.gmra.mxu0 %v66
    %v125 = vpop.f32.mrf.mxu0
    %v126 = vadd.f32 0.0, %v125
    %v127 = vpop.f32.mrf.mxu0
    %v128 = vadd.f32 0.0, %v127
    %129 = vdwg.mxu0
    %v130 = vand.u32 2147483647, %v126
    %vm131 = vcmp.le.f32.partialorder %v130, 0.7853982
    %vm132 = vcmp.lt.s32.totalorder %v126, 0
    %v133 = vand.u32 %v126, 2139095040
    %v134 = vshrl.u32 %v133, 23
    %v135 = vsub.s32 %v134, 127
    %v136 = vand.u32 2147483647, %v126
    %v137 = vand.u32 %v136, 8388607
    %v138 = vor.u32 %v137, 8388608
    %v139 = vsub.s32 0, %v138
    %v140 = vadd.s32 %v135, 1
    %vm141 = vcmp.gt.s32.totalorder %v140, 0
    %v142 = vsel %vm141, %v140, 0
    %v143 = vshrl.u32 %v142, 5
    %v144 = vand.u32 %v142, 31
    %v145 = vsub.s32 32, %v144
    %v146 = vshrl.u32 683565275, %v145
    %v147 = vshll.u32 683565275, %v144
    %v148 = vshrl.u32 2475754826, %v145
    %v149 = vor.u32 %v147, %v148
    %v150 = vshll.u32 2475754826, %v144
    %v151 = vshrl.u32 2131351028, %v145
    %v152 = vor.u32 %v150, %v151
    %v153 = vshll.u32 2131351028, %v144
    %v154 = vshrl.u32 2102212464, %v145
    %v155 = vor.u32 %v153, %v154
    %v156 = vshll.u32 2102212464, %v144
    %v157 = vshrl.u32 920167782, %v145
    %v158 = vor.u32 %v156, %v157
    %v159 = vshll.u32 920167782, %v144
    %v160 = vshrl.u32 1326507024, %v145
    %v161 = vor.u32 %v159, %v160
    %vm162 = vcmp.lt.s32.totalorder %v143, 1
    %vm163 = vcmp.lt.s32.totalorder %v143, 2
    %vm164 = vcmp.lt.s32.totalorder %v143, 3
    %vm165 = vcmp.lt.s32.totalorder %v143, 4
    %v166 = vsel %vm162, %v146, %v149
    %v167 = vsel %vm165, %v155, 2102212464
    %v168 = vsel %vm164, %v152, %v167
    %v169 = vsel %vm163, %v166, %v168
    %v170 = vsel %vm162, %v149, %v152
    %v171 = vsel %vm165, %v158, 920167782
    %v172 = vsel %vm164, %v155, %v171
    %v173 = vsel %vm163, %v170, %v172
    %v174 = vsel %vm162, %v152, %v155
    %v175 = vsel %vm165, %v161, 1326507024
    %v176 = vsel %vm164, %v158, %v175
    %v177 = vsel %vm163, %v174, %v176
    %v178 = vshll.u32 %v138, 8
    %v179 = vand.u32 %v178, 65535
    %v180 = vshrl.u32 %v178, 16
    %v181 = vand.u32 %v177, 65535
    %v182 = vshrl.u32 %v177, 16
    %v183 = vmul.u32 %v179, %v181
    %v184 = vmul.u32 %v179, %v182
    %v185 = vmul.u32 %v180, %v181
    %v186 = vmul.u32 %v180, %v182
    %v187 = vshll.u32 %v184, 16
    %v188 = vshrl.u32 %v184, 16
    %v189 = vshll.u32 %v185, 16
    %v190 = vshrl.u32 %v185, 16
    %vm191 = vc.u32 %v183, %v187
    %v192 = vsel %vm191, 1, 0
    %v193 = vadd.s32 %v183, %v187
    %v194 = vadd.s32 %v186, %v192
    %vm195 = vc.u32 %v193, %v189
    %v196 = vsel %vm195, 1, 0
    %v197 = vadd.s32 %v193, %v189
    %v198 = vadd.s32 %v194, %v196
    %v199 = vadd.s32 %v198, %v188
    %v200 = vadd.s32 %v199, %v190
    %v201 = vand.u32 %v178, 65535
    %v202 = vshrl.u32 %v178, 16
    %v203 = vand.u32 %v173, 65535
    %v204 = vshrl.u32 %v173, 16
    %v205 = vmul.u32 %v201, %v203
    %v206 = vmul.u32 %v201, %v204
    %v207 = vmul.u32 %v202, %v203
    %v208 = vmul.u32 %v202, %v204
    %v209 = vshll.u32 %v206, 16
    %v210 = vshrl.u32 %v206, 16
    %v211 = vshll.u32 %v207, 16
    %v212 = vshrl.u32 %v207, 16
    %vm213 = vc.u32 %v205, %v209
    %v214 = vsel %vm213, 1, 0
    %v215 = vadd.s32 %v205, %v209
    %v216 = vadd.s32 %v208, %v214
    %vm217 = vc.u32 %v215, %v211
    %v218 = vsel %vm217, 1, 0
    %v219 = vadd.s32 %v215, %v211
    %v220 = vadd.s32 %v216, %v218
    %v221 = vadd.s32 %v220, %v210
    %v222 = vadd.s32 %v221, %v212
    %v223 = vmul.u32 %v178, %v169
    %v224 = vadd.s32 %v200, %v219
    %vm225 = vc.u32 %v200, %v219
    %v226 = vadd.s32 %v222, 1
    %v227 = vsel %vm225, %v226, %v222
    %v228 = vadd.s32 %v223, %v227
    %v229 = vadd.s32 %v228, 536870912
    %v230 = vshrl.u32 %v229, 30
    %v231 = vshll.u32 %v230, 30
    %v232 = vsub.s32 %v228, %v231
    %vm233 = vcmp.lt.s32.totalorder %v232, 0
    %v234 = vsub.s32 0, %v232
    %v235 = vsel %vm233, %v234, %v232
    %v236 = vclz %v235
    %v237 = vsub.s32 %v236, 2
    %vm238 = vcmp.gt.s32.totalorder 0, %v237
    %v239 = vsel %vm238, 0, %v237
    %v240 = vsub.s32 32, %v239
    %v241 = vshll.u32 %v232, %v239
    %v242 = vshrl.u32 %v224, %v240
    %v243 = vor.u32 %v241, %v242
    %v244 = vsub.s32 4294967266, %v239
    %v245 = vadd.s32 %v244, 127
    %v246 = vshll.u32 %v245, 23
    %v247 = vor.u32 4788187, %v246
    %v248 = vand.u32 2147483647, %v247
    %v250 = vcvt.s32.f32 %v243
    %v251 = vmul.f32 %v250, %v248
    %v252 = vxor.u32 %v251, 2147483648
    %v253 = vsel %vm132, %v252, %v251
    %v254 = vsub.s32 4, %v230
    %v255 = vsel %vm132, %v254, %v230
    %v256 = vsel %vm131, %v126, %v253
    %v257 = vsel %vm131, 0, %v255
    %v258 = vmul.f32 %v256, %v256
    %v259 = vmul.f32 %v258, -0.001358992
    %v260 = vadd.f32 %v259, 0.041655596
    %v261 = vmul.f32 %v258, %v260
    %v262 = vadd.f32 %v261, -0.4999988
    %v263 = vmul.f32 %v258, %v262
    %v264 = vadd.f32 1.0, %v263
    %v265 = vmul.f32 %v256, %v256
    %v266 = vmul.f32 %v265, -0.00019511016
    %v267 = vadd.f32 %v266, 0.008332121
    %v268 = vmul.f32 %v265, %v267
    %v269 = vadd.f32 %v268, -0.16666654
    %v270 = vmul.f32 %v265, %v269
    %v271 = vadd.f32 %v270, 1.0
    %v272 = vmul.f32 %v271, %v256
    %vm273 = vweird.f32 %v126
    %v274 = vadd.s32 %v257, 3
    %v275 = vand.u32 %v274, 3
    %vm276 = vcmp.lt.s32.totalorder %v275, 2
    %vm277 = vcmp.eq.s32.totalorder %v275, 0
    %v278 = vxor.u32 %v272, 2147483648
    %v279 = vsel %vm277, %v264, %v278
    %vm280 = vcmp.eq.s32.totalorder %v275, 2
    %v281 = vxor.u32 %v264, 2147483648
    %v282 = vsel %vm280, %v281, %v272
    %v283 = vsel %vm276, %v279, %v282
    %v284 = vsel %vm273, nan, %v283
    %v285 = vand.u32 2147483647, %v128
    %vm286 = vcmp.le.f32.partialorder %v285, 0.7853982
    %vm287 = vcmp.lt.s32.totalorder %v128, 0
    %v288 = vand.u32 %v128, 2139095040
    %v289 = vshrl.u32 %v288, 23
    %v290 = vsub.s32 %v289, 127
    %v291 = vand.u32 2147483647, %v128
    %v292 = vand.u32 %v291, 8388607
    %v293 = vor.u32 %v292, 8388608
    %v294 = vsub.s32 0, %v293
    %v295 = vadd.s32 %v290, 1
    %vm296 = vcmp.gt.s32.totalorder %v295, 0
    %v297 = vsel %vm296, %v295, 0
    %v298 = vshrl.u32 %v297, 5
    %v299 = vand.u32 %v297, 31
    %v300 = vsub.s32 32, %v299
    %v301 = vshrl.u32 683565275, %v300
    %v302 = vshll.u32 683565275, %v299
    %v303 = vshrl.u32 2475754826, %v300
    %v304 = vor.u32 %v302, %v303
    %v305 = vshll.u32 2475754826, %v299
    %v306 = vshrl.u32 2131351028, %v300
    %v307 = vor.u32 %v305, %v306
    %v308 = vshll.u32 2131351028, %v299
    %v309 = vshrl.u32 2102212464, %v300
    %v310 = vor.u32 %v308, %v309
    %v311 = vshll.u32 2102212464, %v299
    %v312 = vshrl.u32 920167782, %v300
    %v313 = vor.u32 %v311, %v312
    %v314 = vshll.u32 920167782, %v299
    %v315 = vshrl.u32 1326507024, %v300
    %v316 = vor.u32 %v314, %v315
    %vm317 = vcmp.lt.s32.totalorder %v298, 1
    %vm318 = vcmp.lt.s32.totalorder %v298, 2
    %vm319 = vcmp.lt.s32.totalorder %v298, 3
    %vm320 = vcmp.lt.s32.totalorder %v298, 4
    %v321 = vsel %vm317, %v301, %v304
    %v322 = vsel %vm320, %v310, 2102212464
    %v323 = vsel %vm319, %v307, %v322
    %v324 = vsel %vm318, %v321, %v323
    %v325 = vsel %vm317, %v304, %v307
    %v326 = vsel %vm320, %v313, 920167782
    %v327 = vsel %vm319, %v310, %v326
    %v328 = vsel %vm318, %v325, %v327
    %v329 = vsel %vm317, %v307, %v310
    %v330 = vsel %vm320, %v316, 1326507024
    %v331 = vsel %vm319, %v313, %v330
    %v332 = vsel %vm318, %v329, %v331
    %v333 = vshll.u32 %v293, 8
    %v334 = vand.u32 %v333, 65535
    %v335 = vshrl.u32 %v333, 16
    %v336 = vand.u32 %v332, 65535
    %v337 = vshrl.u32 %v332, 16
    %v338 = vmul.u32 %v334, %v336
    %v339 = vmul.u32 %v334, %v337
    %v340 = vmul.u32 %v335, %v336
    %v341 = vmul.u32 %v335, %v337
    %v342 = vshll.u32 %v339, 16
    %v343 = vshrl.u32 %v339, 16
    %v344 = vshll.u32 %v340, 16
    %v345 = vshrl.u32 %v340, 16
    %vm346 = vc.u32 %v338, %v342
    %v347 = vsel %vm346, 1, 0
    %v348 = vadd.s32 %v338, %v342
    %v349 = vadd.s32 %v341, %v347
    %vm350 = vc.u32 %v348, %v344
    %v351 = vsel %vm350, 1, 0
    %v352 = vadd.s32 %v348, %v344
    %v353 = vadd.s32 %v349, %v351
    %v354 = vadd.s32 %v353, %v343
    %v355 = vadd.s32 %v354, %v345
    %v356 = vand.u32 %v333, 65535
    %v357 = vshrl.u32 %v333, 16
    %v358 = vand.u32 %v328, 65535
    %v359 = vshrl.u32 %v328, 16
    %v360 = vmul.u32 %v356, %v358
    %v361 = vmul.u32 %v356, %v359
    %v362 = vmul.u32 %v357, %v358
    %v363 = vmul.u32 %v357, %v359
    %v364 = vshll.u32 %v361, 16
    %v365 = vshrl.u32 %v361, 16
    %v366 = vshll.u32 %v362, 16
    %v367 = vshrl.u32 %v362, 16
    %vm368 = vc.u32 %v360, %v364
    %v369 = vsel %vm368, 1, 0
    %v370 = vadd.s32 %v360, %v364
    %v371 = vadd.s32 %v363, %v369
    %vm372 = vc.u32 %v370, %v366
    %v373 = vsel %vm372, 1, 0
    %v374 = vadd.s32 %v370, %v366
    %v375 = vadd.s32 %v371, %v373
    %v376 = vadd.s32 %v375, %v365
    %v377 = vadd.s32 %v376, %v367
    %v378 = vmul.u32 %v333, %v324
    %v379 = vadd.s32 %v355, %v374
    %vm380 = vc.u32 %v355, %v374
    %v381 = vadd.s32 %v377, 1
    %v382 = vsel %vm380, %v381, %v377
    %v383 = vadd.s32 %v378, %v382
    %v384 = vadd.s32 %v383, 536870912
    %v385 = vshrl.u32 %v384, 30
    %v386 = vshll.u32 %v385, 30
    %v387 = vsub.s32 %v383, %v386
    %vm388 = vcmp.lt.s32.totalorder %v387, 0
    %v389 = vsub.s32 0, %v387
    %v390 = vsel %vm388, %v389, %v387
    %v391 = vclz %v390
    %v392 = vsub.s32 %v391, 2
    %vm393 = vcmp.gt.s32.totalorder 0, %v392
    %v394 = vsel %vm393, 0, %v392
    %v395 = vsub.s32 32, %v394
    %v396 = vshll.u32 %v387, %v394
    %v397 = vshrl.u32 %v379, %v395
    %v398 = vor.u32 %v396, %v397
    %v399 = vsub.s32 4294967266, %v394
    %v400 = vadd.s32 %v399, 127
    %v401 = vshll.u32 %v400, 23
    %v402 = vor.u32 4788187, %v401
    %v403 = vand.u32 2147483647, %v402
    %v405 = vcvt.s32.f32 %v398
    %v406 = vmul.f32 %v405, %v403
    %v407 = vxor.u32 %v406, 2147483648
    %v408 = vsel %vm287, %v407, %v406
    %v409 = vsub.s32 4, %v385
    %v410 = vsel %vm287, %v409, %v385
    %v411 = vsel %vm286, %v128, %v408
    %v412 = vsel %vm286, 0, %v410
    %v413 = vmul.f32 %v411, %v411
    %v414 = vmul.f32 %v413, -0.001358992
    %v415 = vadd.f32 %v414, 0.041655596
    %v416 = vmul.f32 %v413, %v415
    %v417 = vadd.f32 %v416, -0.4999988
    %v418 = vmul.f32 %v413, %v417
    %v419 = vadd.f32 1.0, %v418
    %v420 = vmul.f32 %v411, %v411
    %v421 = vmul.f32 %v420, -0.00019511016
    %v422 = vadd.f32 %v421, 0.008332121
    %v423 = vmul.f32 %v420, %v422
    %v424 = vadd.f32 %v423, -0.16666654
    %v425 = vmul.f32 %v420, %v424
    %v426 = vadd.f32 %v425, 1.0
    %v427 = vmul.f32 %v426, %v411
    %vm428 = vweird.f32 %v128
    %v429 = vadd.s32 %v412, 3
    %v430 = vand.u32 %v429, 3
    %vm431 = vcmp.lt.s32.totalorder %v430, 2
    %vm432 = vcmp.eq.s32.totalorder %v430, 0
    %v433 = vxor.u32 %v427, 2147483648
    %v434 = vsel %vm432, %v419, %v433
    %vm435 = vcmp.eq.s32.totalorder %v430, 2
    %v436 = vxor.u32 %v419, 2147483648
    %v437 = vsel %vm435, %v436, %v427
    %v438 = vsel %vm431, %v434, %v437
    %v439 = vsel %vm428, nan, %v438
    %440 = vst [vmem:[#allocation7] sm:$0xff] %v284
    %441 = vst [vmem:[#allocation7 + $0x8] sm:$0xff] %v439
    // Predicated region
    $region18: #{tpu_custom_call.1} parent=1 // pred_check
      _
    $region19: #{tpu_custom_call.1} parent=1 // pred_check_branch
      %443 = sbr.rel (0) target = $region21
    $region20: #{tpu_custom_call.1} parent=1 // pred_region
      %445 = vsyncadd [#allocation4], 0
      %s446 = sshll.u32 [#allocation7], 4
      %s447 = int_to_ptr.vmem [resolvable:$true] %s446
      %s448 = sshll.u32 %s2, 4
      %s449 = int_to_ptr.hbm [resolvable:$true] %s448
      %454 = dma.vmem_to_hbm [thread:$0]  %s447, 256, %s449, [#allocation4], 128, 128, 8
    $region21: #{tpu_custom_call.1} parent=1 // pred_fallthru
      _
    // Predicated region
    $region22: #{tpu_custom_call.1} parent=1 // pred_check
      _
    $region23: #{tpu_custom_call.1} parent=1 // pred_check_branch
      %456 = sbr.rel (0) target = $region25
    $region24: #{tpu_custom_call.1} parent=1 // pred_region
      %458 = dma.done [#allocation4], 256
    $region25: #{tpu_custom_call.1} parent=1 // pred_fallthru
      _
    %459 = vsyncpa [#allocation3], 1
    %460 = vsyncpa [#allocation6], 1
    %461 = vsyncpa [#allocation4], 1

</llo_original>
